<compile_context>
chip_gen: v6e
topology: v6e:2x2x1
jax: 0.10.0
libtpu: 0.0.40
codegen_flags: <defaults>
</compile_context>

<pallas_src>
import functools

import jax
import jax.numpy as jnp
from jax.experimental import pallas as pl
from jax.experimental.pallas import tpu as pltpu


def _rup(x, m):
    return ((x + m - 1) // m) * m


def _largest_divisor_leq(n, cap):
    cap = max(1, min(n, cap))
    for d in range(cap, 0, -1):
        if n % d == 0:
            return d
    return 1


def _mutan_kernel(vis_ref, lang_ref, wv_ref, bv_ref, wl_ref, bl_ref, out_ref):
    # vis_ref:  (Nb, vis_dim, T)    lang_ref: (Nb, lang_dim, T)
    # wv_ref:   (hid, vis_dim)      wl_ref:   (hid, lang_dim)
    # bv_ref/bl_ref: (hid, 1)       out_ref:  (Nb, hid, T)
    nb = out_ref.shape[0]
    wv = wv_ref[...]
    wl = wl_ref[...]
    bv = bv_ref[...]
    bl = bl_ref[...]
    # Static (fully unrolled) loop over the images packed into this grid step.
    for b in range(nb):
        vt = jnp.dot(wv, vis_ref[b], preferred_element_type=jnp.float32) + bv
        lt = jnp.dot(wl, lang_ref[b], preferred_element_type=jnp.float32) + bl
        out_ref[b] = (jnp.tanh(vt) * jnp.tanh(lt)).astype(out_ref.dtype)


def mutan_head_pallas(vis_feat, lang_feat, w_vis, b_vis, w_lang, b_lang, *,
                      tile_hw=None, images_per_step=None):
    """vis_feat: (N, vis_dim, H, W), lang_feat: (N, lang_dim, H, W)  (NCHW, as in PyTorch).
    w_vis: (hid, vis_dim)  [Conv2d (out, in) layout for k=1], b_vis: (hid,),
    w_lang: (hid, lang_dim), b_lang: (hid,).
    Returns (N, hid, H, W) NCHW, matching the PyTorch module output."""
    N, vis_dim, H, W = vis_feat.shape
    Nl, lang_dim, Hl, Wl = lang_feat.shape
    assert (N, H, W) == (Nl, Hl, Wl), "batch/spatial dims of vis and lang must match"
    hid = w_vis.shape[0]
    assert w_vis.shape == (hid, vis_dim) and w_lang.shape == (hid, lang_dim)
    assert b_vis.shape == (hid,) and b_lang.shape == (hid,)

    HW = H * W
    out_dtype = jnp.result_type(vis_feat.dtype, lang_feat.dtype)

    # NCHW -> (N, C, HW): pure reshape, no data movement.
    vis3 = vis_feat.reshape(N, vis_dim, HW)
    lang3 = lang_feat.reshape(N, lang_dim, HW)

    # ---- per-generation VMEM budget ----------------------------------------------
    try:
        vmem_cap = int(pltpu.get_tpu_info().vmem_capacity_bytes)
    except Exception:
        vmem_cap = 64 * 1024 * 1024  # conservative fallback (v7x has 64 MiB/TC)
    vmem_limit = min(int(vmem_cap * 3 // 4), 100 * 1024 * 1024)   # scoped limit with headroom
    budget = max(8 * 1024 * 1024, vmem_limit - 4 * 1024 * 1024)   # bytes for pipelined tiles

    # Bytes per lane-column (sublane-padded to 8 rows), double-buffered by the pipeline.
    bytes_per_col = (_rup(vis_dim, 8) * vis_feat.dtype.itemsize
                     + _rup(lang_dim, 8) * lang_feat.dtype.itemsize
                     + _rup(hid, 8) * jnp.dtype(out_dtype).itemsize)
    cols_budget = max(128, budget // (2 * bytes_per_col))

    # ---- tile_hw selection ---------------------------------------------------------
    if tile_hw is None:
        if HW <= cols_budget:
            tile_hw = HW                      # full spatial extent in one block
        else:
            tile_hw = max(128, (cols_budget // 128) * 128)
    # Mosaic constraint / lane-dense stores: multiple of 128, or the full extent.
    assert tile_hw % 128 == 0 or tile_hw == HW, (
        f"tile_hw={tile_hw} must be a multiple of 128 or equal to H*W={HW}")
    num_s = pl.cdiv(HW, tile_hw)

    # ---- images per grid step (amortize per-step overhead for small feature maps) ---
    if images_per_step is None:
        remaining = max(1, cols_budget // tile_hw)
        nb = _largest_divisor_leq(N, min(remaining, 8))
    else:
        nb = images_per_step
        assert N % nb == 0, f"images_per_step={nb} must divide N={N}"

    # ---- keep >=2 parallel grid steps so both v7x TensorCores get work ---------------
    if (N // nb) * num_s < 2:
        if nb > 1 and N >= 2:
            nb = _largest_divisor_leq(N, N // 2)          # gives N//nb >= 2
        elif num_s == 1 and HW >= 256:
            tile_hw = max(128, (((HW + 1) // 2) // 128) * 128)
            num_s = pl.cdiv(HW, tile_hw)
    num_nb = N // nb

    # ---- parameter prep (tiny, stays VMEM-resident) ---------------------------------
    bv = b_vis.reshape(hid, 1).astype(jnp.float32)
    bl = b_lang.reshape(hid, 1).astype(jnp.float32)

    # ---- cost estimate (memory-bound custom call; helps XLA scheduling) --------------
    bytes_accessed = int(
        N * HW * (vis_dim * vis_feat.dtype.itemsize
                  + lang_dim * lang_feat.dtype.itemsize
                  + hid * jnp.dtype(out_dtype).itemsize)
        + w_vis.size * w_vis.dtype.itemsize + w_lang.size * w_lang.dtype.itemsize
        + 2 * hid * 4)
    cost = pl.CostEstimate(
        flops=int(2 * N * HW * hid * (vis_dim + lang_dim) + 3 * N * HW * hid),
        transcendentals=int(2 * N * HW * hid),
        bytes_accessed=bytes_accessed)

    # TODO(synk): for tiny non-128-aligned feature maps (e.g. 7x7) output stores are
    # masked (vst.msk); packing several images' HW into the lane axis would need an
    # HBM transpose in NCHW layout, so we accept masked stores there.
    out3 = pl.pallas_call(
        _mutan_kernel,
        out_shape=jax.ShapeDtypeStruct((N, hid, HW), out_dtype),
        grid_spec=pltpu.PrefetchScalarGridSpec(
            num_scalar_prefetch=0,
            grid=(num_nb, num_s),
            in_specs=[
                pl.BlockSpec((nb, vis_dim, tile_hw), lambda n, s: (n, 0, s)),
                pl.BlockSpec((nb, lang_dim, tile_hw), lambda n, s: (n, 0, s)),
                pl.BlockSpec((hid, vis_dim), lambda n, s: (0, 0)),
                pl.BlockSpec((hid, 1), lambda n, s: (0, 0)),
                pl.BlockSpec((hid, lang_dim), lambda n, s: (0, 0)),
                pl.BlockSpec((hid, 1), lambda n, s: (0, 0)),
            ],
            out_specs=pl.BlockSpec((nb, hid, tile_hw), lambda n, s: (n, 0, s)),
        ),
        compiler_params=pltpu.CompilerParams(
            dimension_semantics=("parallel", "parallel"),
            vmem_limit_bytes=vmem_limit),
        cost_estimate=cost,
    )(vis3, lang3, w_vis, bv, w_lang, bl)

    return out3.reshape(N, hid, H, W)


def _reference(vis_feat, lang_feat, w_vis, b_vis, w_lang, b_lang):
    # pure-JAX reference of the PyTorch forward (1x1 convs as einsum over channels)
    vt = jnp.tanh(jnp.einsum('nchw,oc->nohw', vis_feat, w_vis)
                  + b_vis[None, :, None, None])
    lt = jnp.tanh(jnp.einsum('nchw,oc->nohw', lang_feat, w_lang)
                  + b_lang[None, :, None, None])
    return vt * lt


if __name__ == "__main__":
    key = jax.random.PRNGKey(0)
    k1, k2, k3, k4, k5, k6 = jax.random.split(key, 6)

    N, H, W = 2, 16, 16
    vis_dim, lang_dim, hid_dim = 4, 8, 32

    vis_feat = jax.random.normal(k1, (N, vis_dim, H, W), dtype=jnp.float32)
    lang_feat = jax.random.normal(k2, (N, lang_dim, H, W), dtype=jnp.float32)

    # Conv2d(k=1) weight in (out_channels, in_channels) layout, bias (out_channels,)
    w_vis = 0.1 * jax.random.normal(k3, (hid_dim, vis_dim), dtype=jnp.float32)
    b_vis = 0.05 * jax.random.normal(k4, (hid_dim,), dtype=jnp.float32)
    w_lang = 0.1 * jax.random.normal(k5, (hid_dim, lang_dim), dtype=jnp.float32)
    b_lang = 0.05 * jax.random.normal(k6, (hid_dim,), dtype=jnp.float32)

    out = mutan_head_pallas(vis_feat, lang_feat, w_vis, b_vis, w_lang, b_lang)
    out = jax.block_until_ready(out)

    ref = _reference(vis_feat, lang_feat, w_vis, b_vis, w_lang, b_lang)
    assert out.shape == (N, hid_dim, H, W)
    assert jnp.allclose(out, ref, atol=1e-5, rtol=1e-5)

    # Extra correctness check: non-128-aligned spatial extent (7x7 -> masked stores path).
    H2 = W2 = 7
    vis2 = jax.random.normal(k1, (N, vis_dim, H2, W2), dtype=jnp.float32)
    lang2 = jax.random.normal(k2, (N, lang_dim, H2, W2), dtype=jnp.float32)
    out2 = jax.block_until_ready(
        mutan_head_pallas(vis2, lang2, w_vis, b_vis, w_lang, b_lang))
    ref2 = _reference(vis2, lang2, w_vis, b_vis, w_lang, b_lang)
    assert jnp.allclose(out2, ref2, atol=1e-5, rtol=1e-5)

    print("KERNEL_OK")
</pallas_src>

<mosaic_0001>
module attributes {stable_mosaic.version = 11 : i64} {
  func.func @_mutan_kernel(%arg0: i32, %arg1: i32, %arg2: memref<1x4x256xf32, #tpu.memory_space<vmem>>, %arg3: memref<1x8x256xf32, #tpu.memory_space<vmem>>, %arg4: memref<32x4xf32, #tpu.memory_space<vmem>>, %arg5: memref<32x1xf32, #tpu.memory_space<vmem>>, %arg6: memref<32x8xf32, #tpu.memory_space<vmem>>, %arg7: memref<32x1xf32, #tpu.memory_space<vmem>>, %arg8: memref<1x32x256xf32, #tpu.memory_space<vmem>>) attributes {dimension_semantics = [#tpu.dimension_semantics<parallel>, #tpu.dimension_semantics<parallel>], iteration_bounds = array<i64: 2, 1>, scalar_prefetch = 0 : i64, scratch_operands = 0 : i64, tpu.core_type = #tpu.core_type<tc>, window_params = [{transform_indices = @transform_0, window_bounds = array<i64: 1, 4, 256>}, {transform_indices = @transform_1, window_bounds = array<i64: 1, 8, 256>}, {pipeline_mode = #tpu.pipeline_mode<synchronous>, transform_indices = @transform_2, window_bounds = array<i64: 32, 4>}, {pipeline_mode = #tpu.pipeline_mode<synchronous>, transform_indices = @transform_3, window_bounds = array<i64: 32, 1>}, {pipeline_mode = #tpu.pipeline_mode<synchronous>, transform_indices = @transform_4, window_bounds = array<i64: 32, 8>}, {pipeline_mode = #tpu.pipeline_mode<synchronous>, transform_indices = @transform_5, window_bounds = array<i64: 32, 1>}, {transform_indices = @transform_6, window_bounds = array<i64: 1, 32, 256>}]} {
    %c0 = arith.constant 0 : index
    %c0_0 = arith.constant 0 : index
    %0 = vector.load %arg4[%c0, %c0_0] : memref<32x4xf32, #tpu.memory_space<vmem>>, vector<32x4xf32>
    %c0_1 = arith.constant 0 : index
    %c0_2 = arith.constant 0 : index
    %1 = vector.load %arg6[%c0_1, %c0_2] : memref<32x8xf32, #tpu.memory_space<vmem>>, vector<32x8xf32>
    %c0_3 = arith.constant 0 : index
    %c0_4 = arith.constant 0 : index
    %2 = vector.load %arg5[%c0_3, %c0_4] : memref<32x1xf32, #tpu.memory_space<vmem>>, vector<32x1xf32>
    %c0_5 = arith.constant 0 : index
    %c0_6 = arith.constant 0 : index
    %3 = vector.load %arg7[%c0_5, %c0_6] : memref<32x1xf32, #tpu.memory_space<vmem>>, vector<32x1xf32>
    %c0_7 = arith.constant 0 : index
    %c0_8 = arith.constant 0 : index
    %c0_9 = arith.constant 0 : index
    %4 = vector.load %arg2[%c0_7, %c0_8, %c0_9] : memref<1x4x256xf32, #tpu.memory_space<vmem>>, vector<1x4x256xf32>
    %5 = vector.shape_cast %4 : vector<1x4x256xf32> to vector<4x256xf32>
    %cst = arith.constant dense<0.000000e+00> : vector<32x256xf32>
    %6 = tpu.matmul %0, %5, %cst {dimension_numbers = #tpu.dot_dimension_numbers<[1], [0], [0], [1], [0, 0, 1, 1], [], []>} : vector<32x4xf32>, vector<4x256xf32>, vector<32x256xf32> -> vector<32x256xf32>
    %7 = vector.broadcast %2 : vector<32x1xf32> to vector<32x256xf32>
    %8 = arith.addf %6, %7 : vector<32x256xf32>
    %c0_10 = arith.constant 0 : index
    %c0_11 = arith.constant 0 : index
    %c0_12 = arith.constant 0 : index
    %9 = vector.load %arg3[%c0_10, %c0_11, %c0_12] : memref<1x8x256xf32, #tpu.memory_space<vmem>>, vector<1x8x256xf32>
    %10 = vector.shape_cast %9 : vector<1x8x256xf32> to vector<8x256xf32>
    %cst_13 = arith.constant dense<0.000000e+00> : vector<32x256xf32>
    %11 = tpu.matmul %1, %10, %cst_13 {dimension_numbers = #tpu.dot_dimension_numbers<[1], [0], [0], [1], [0, 0, 1, 1], [], []>} : vector<32x8xf32>, vector<8x256xf32>, vector<32x256xf32> -> vector<32x256xf32>
    %12 = vector.broadcast %3 : vector<32x1xf32> to vector<32x256xf32>
    %13 = arith.addf %11, %12 : vector<32x256xf32>
    %14 = math.tanh %8 : vector<32x256xf32>
    %15 = math.tanh %13 : vector<32x256xf32>
    %16 = arith.mulf %14, %15 : vector<32x256xf32>
    %c0_14 = arith.constant 0 : index
    %c0_15 = arith.constant 0 : index
    %c0_16 = arith.constant 0 : index
    %17 = vector.load %arg8[%c0_14, %c0_15, %c0_16] : memref<1x32x256xf32, #tpu.memory_space<vmem>>, vector<1x32x256xf32>
    %18 = vector.shape_cast %17 : vector<1x32x256xf32> to vector<32x256xf32>
    %19 = vector.shape_cast %16 : vector<32x256xf32> to vector<1x32x256xf32>
    tpu.vector_store %arg8[%c0_14, %c0_15, %c0_16], %19 {strides = array<i32>} : memref<1x32x256xf32, #tpu.memory_space<vmem>>, vector<1x32x256xf32>,
    return
  }
  func.func @transform_0(%arg0: i32, %arg1: i32) -> (i32, i32, i32) {
    %c0_i32 = arith.constant 0 : i32
    %c0_i32_0 = arith.constant 0 : i32
    return %arg0, %c0_i32, %arg1 : i32, i32, i32
  }
  func.func @transform_1(%arg0: i32, %arg1: i32) -> (i32, i32, i32) {
    %c0_i32 = arith.constant 0 : i32
    %c0_i32_0 = arith.constant 0 : i32
    return %arg0, %c0_i32, %arg1 : i32, i32, i32
  }
  func.func @transform_2(%arg0: i32, %arg1: i32) -> (i32, i32) {
    %c0_i32 = arith.constant 0 : i32
    %c0_i32_0 = arith.constant 0 : i32
    %c0_i32_1 = arith.constant 0 : i32
    return %c0_i32, %c0_i32_0 : i32, i32
  }
  func.func @transform_3(%arg0: i32, %arg1: i32) -> (i32, i32) {
    %c0_i32 = arith.constant 0 : i32
    %c0_i32_0 = arith.constant 0 : i32
    %c0_i32_1 = arith.constant 0 : i32
    return %c0_i32, %c0_i32_0 : i32, i32
  }
  func.func @transform_4(%arg0: i32, %arg1: i32) -> (i32, i32) {
    %c0_i32 = arith.constant 0 : i32
    %c0_i32_0 = arith.constant 0 : i32
    %c0_i32_1 = arith.constant 0 : i32
    return %c0_i32, %c0_i32_0 : i32, i32
  }
  func.func @transform_5(%arg0: i32, %arg1: i32) -> (i32, i32) {
    %c0_i32 = arith.constant 0 : i32
    %c0_i32_0 = arith.constant 0 : i32
    %c0_i32_1 = arith.constant 0 : i32
    return %c0_i32, %c0_i32_0 : i32, i32
  }
  func.func @transform_6(%arg0: i32, %arg1: i32) -> (i32, i32, i32) {
    %c0_i32 = arith.constant 0 : i32
    %c0_i32_0 = arith.constant 0 : i32
    return %arg0, %c0_i32, %arg1 : i32, i32, i32
  }
}

</mosaic_0001>

<llo_original>
// kernel: tpu_custom_call.1
$region0: #{tpu_custom_call.1}
  #allocation0 [shape = 'u32[]', space=smem, size = 0x4, offset = 0x4, fixed_abs, tag = 'smem constant byte address 0x4 - core index']
  #allocation1 [shape = 'u32[144,128]{1,0:T(1,128)}', space=vmem, size = 0x12000, scoped, tag = 'internal scratch']
  %s0 = inlined_call_operand.vmem [shape: f32[2,4,256], index: 0, kind: input, shape index: {}]
  %s1 = inlined_call_operand.vmem [shape: f32[2,8,256], index: 1, kind: input, shape index: {}]
  %s2 = inlined_call_operand.vmem [shape: f32[32,4], index: 2, kind: input, shape index: {}]
  %s3 = inlined_call_operand.vmem [shape: f32[32,1], index: 3, kind: input, shape index: {}]
  %s4 = inlined_call_operand.vmem [shape: f32[32,8], index: 4, kind: input, shape index: {}]
  %s5 = inlined_call_operand.vmem [shape: f32[32,1], index: 5, kind: input, shape index: {}]
  %s6 = inlined_call_operand.hbm [shape: f32[2,32,256], index: 6, kind: output, shape index: {}]
  %s7 = sld [smem:[#allocation0]]
  $region57: #{tpu_custom_call.1} parent=0
    _
  %s9 = ssub.s32 1, %s7
  %s10 = scalar_select 0, %s9, %s7
  $region1: #{tpu_custom_call.1} parent=0
    #allocation2 [shape = 'u8[65536]{0}', space=vmem, size = 0x10000, scoped, tag = 'output window, operand 0']
    #allocation3 [shape = 's32[2]{0}', space=sflag, size = 0x8, scoped, tag = 'scoped memory for tpu_custom_call.1']
    %11 = vsyncpa [#allocation3], 0
    %s12 = scalar_lea.sflag [#allocation3], 1
    %13 = vsyncpa %s12, 0
    loop: start=0, step=1, limit=4
    $region2: #{tpu_custom_call.1} parent=1 // loop_pre_header
      _
    $region3: #{tpu_custom_call.1} parent=1 // loop_header
      %s15 = sphi 0, %s19
      %p16 = scmp.ge.s32.totalorder %s15, 4
      %s22 = sphi 0, %s34
      %s23 = sphi 0, %s30
      %s24 = sphi 0, %s22
      %s25 = sphi 0, %s23
      %s26 = sphi 0, %s24
      %s27 = sphi 0, %s25
      %s39 = sphi 0, %s41
      %s42 = sphi 0, %s39
      %s43 = sphi 0, %s42
      %s59 = sphi 0, %s43
      %s67 = sphi 0, %s69
      %s70 = sphi 0, %s67
      %s71 = sphi 0, %s70
      %s87 = sphi 0, %s71
      %s91 = sphi 0, %s91
      %s93 = sphi 0, %s91
      %s94 = sphi 0, %s93
      %s108 = sphi 0, %s94
      %s112 = sphi 0, %s112
      %s114 = sphi 0, %s112
      %s115 = sphi 0, %s114
      %s129 = sphi 0, %s115
      %s133 = sphi 0, %s133
      %s135 = sphi 0, %s133
      %s136 = sphi 0, %s135
      %s150 = sphi 0, %s136
      %s154 = sphi 0, %s154
      %s156 = sphi 0, %s154
      %s157 = sphi 0, %s156
      %s171 = sphi 0, %s157
      %s179 = sphi 0, %s181
      %s182 = sphi 0, %s179
      %s183 = sphi 0, %s182
      %s199 = sphi 0, %s183
    $region4: #{tpu_custom_call.1} parent=1 // loop_header_branch
      %18 = sbr.rel (%p16) target = $region8
    $region5: #{tpu_custom_call.1} parent=1 // loop_body
      %s20 = ssub.s32 %s15, 1
      %s21 = ssub.s32 %s15, 2
      %s28 = sadd.s32 1, %s23
      %p29 = scmp.ge.s32.totalorder %s28, 1
      %s30 = scalar_select %p29, 0, %s28
      %s31 = sadd.s32 1, %s22
      %s32 = scalar_select %p29, %s31, %s22
      %p33 = scmp.ge.s32.totalorder %s32, 2
      %s34 = scalar_select %p33, 0, %s32
      %s35 = ssub.s32 %s22, %s34
      %s36 = ssub.s32 %s23, %s30
      %s37 = sor.u32 %s35, %s36
      %p38 = scmp.eq.s32.totalorder %s37, 0
      %s40 = sadd.s32 %s39, 1
      %s41 = scalar_select %p38, %s39, %s40
      %p44 = pneg %p38
      %p45 = scmp.eq.s32.totalorder %s15, 1
      %p46 = por %p44, %p45
      %p47 = scmp.ne.s32.totalorder %s39, %s42
      %p48 = scmp.eq.s32.totalorder %s15, 0
      %p49 = por %p47, %p48
      %p50 = scmp.ne.s32.totalorder %s39, %s42
      %p51 = scmp.eq.s32.totalorder %s20, 1
      %p52 = por %p50, %p51
      %p53 = scmp.ne.s32.totalorder %s42, %s43
      %p54 = scmp.eq.s32.totalorder %s20, 0
      %p55 = por %p53, %p54
      %p56 = scmp.ne.s32.totalorder %s42, %s43
      %p57 = scmp.eq.s32.totalorder %s21, 1
      %p58 = por %p56, %p57
      %p60 = scmp.ne.s32.totalorder %s43, %s59
      %p61 = scmp.eq.s32.totalorder %s21, 0
      %p62 = por %p60, %p61
      %s63 = ssub.s32 %s22, %s34
      %s64 = ssub.s32 %s23, %s30
      %s65 = sor.u32 %s63, %s64
      %p66 = scmp.eq.s32.totalorder %s65, 0
      %s68 = sadd.s32 %s67, 1
      %s69 = scalar_select %p66, %s67, %s68
      %p72 = pneg %p66
      %p73 = scmp.eq.s32.totalorder %s15, 1
      %p74 = por %p72, %p73
      %p75 = scmp.ne.s32.totalorder %s67, %s70
      %p76 = scmp.eq.s32.totalorder %s15, 0
      %p77 = por %p75, %p76
      %p78 = scmp.ne.s32.totalorder %s67, %s70
      %p79 = scmp.eq.s32.totalorder %s20, 1
      %p80 = por %p78, %p79
      %p81 = scmp.ne.s32.totalorder %s70, %s71
      %p82 = scmp.eq.s32.totalorder %s20, 0
      %p83 = por %p81, %p82
      %p84 = scmp.ne.s32.totalorder %s70, %s71
      %p85 = scmp.eq.s32.totalorder %s21, 1
      %p86 = por %p84, %p85
      %p88 = scmp.ne.s32.totalorder %s71, %s87
      %p89 = scmp.eq.s32.totalorder %s21, 0
      %p90 = por %p88, %p89
      %s92 = sadd.s32 %s91, 1
      %p95 = scmp.eq.s32.totalorder %s15, 1
      %p96 = scmp.ne.s32.totalorder %s91, %s93
      %p97 = scmp.eq.s32.totalorder %s15, 0
      %p98 = por %p96, %p97
      %p99 = scmp.ne.s32.totalorder %s91, %s93
      %p100 = scmp.eq.s32.totalorder %s20, 1
      %p101 = por %p99, %p100
      %p102 = scmp.ne.s32.totalorder %s93, %s94
      %p103 = scmp.eq.s32.totalorder %s20, 0
      %p104 = por %p102, %p103
      %p105 = scmp.ne.s32.totalorder %s93, %s94
      %p106 = scmp.eq.s32.totalorder %s21, 1
      %p107 = por %p105, %p106
      %p109 = scmp.ne.s32.totalorder %s94, %s108
      %p110 = scmp.eq.s32.totalorder %s21, 0
      %p111 = por %p109, %p110
      %s113 = sadd.s32 %s112, 1
      %p116 = scmp.eq.s32.totalorder %s15, 1
      %p117 = scmp.ne.s32.totalorder %s112, %s114
      %p118 = scmp.eq.s32.totalorder %s15, 0
      %p119 = por %p117, %p118
      %p120 = scmp.ne.s32.totalorder %s112, %s114
      %p121 = scmp.eq.s32.totalorder %s20, 1
      %p122 = por %p120, %p121
      %p123 = scmp.ne.s32.totalorder %s114, %s115
      %p124 = scmp.eq.s32.totalorder %s20, 0
      %p125 = por %p123, %p124
      %p126 = scmp.ne.s32.totalorder %s114, %s115
      %p127 = scmp.eq.s32.totalorder %s21, 1
      %p128 = por %p126, %p127
      %p130 = scmp.ne.s32.totalorder %s115, %s129
      %p131 = scmp.eq.s32.totalorder %s21, 0
      %p132 = por %p130, %p131
      %s134 = sadd.s32 %s133, 1
      %p137 = scmp.eq.s32.totalorder %s15, 1
      %p138 = scmp.ne.s32.totalorder %s133, %s135
      %p139 = scmp.eq.s32.totalorder %s15, 0
      %p140 = por %p138, %p139
      %p141 = scmp.ne.s32.totalorder %s133, %s135
      %p142 = scmp.eq.s32.totalorder %s20, 1
      %p143 = por %p141, %p142
      %p144 = scmp.ne.s32.totalorder %s135, %s136
      %p145 = scmp.eq.s32.totalorder %s20, 0
      %p146 = por %p144, %p145
      %p147 = scmp.ne.s32.totalorder %s135, %s136
      %p148 = scmp.eq.s32.totalorder %s21, 1
      %p149 = por %p147, %p148
      %p151 = scmp.ne.s32.totalorder %s136, %s150
      %p152 = scmp.eq.s32.totalorder %s21, 0
      %p153 = por %p151, %p152
      %s155 = sadd.s32 %s154, 1
      %p158 = scmp.eq.s32.totalorder %s15, 1
      %p159 = scmp.ne.s32.totalorder %s154, %s156
      %p160 = scmp.eq.s32.totalorder %s15, 0
      %p161 = por %p159, %p160
      %p162 = scmp.ne.s32.totalorder %s154, %s156
      %p163 = scmp.eq.s32.totalorder %s20, 1
      %p164 = por %p162, %p163
      %p165 = scmp.ne.s32.totalorder %s156, %s157
      %p166 = scmp.eq.s32.totalorder %s20, 0
      %p167 = por %p165, %p166
      %p168 = scmp.ne.s32.totalorder %s156, %s157
      %p169 = scmp.eq.s32.totalorder %s21, 1
      %p170 = por %p168, %p169
      %p172 = scmp.ne.s32.totalorder %s157, %s171
      %p173 = scmp.eq.s32.totalorder %s21, 0
      %p174 = por %p172, %p173
      %s175 = ssub.s32 %s22, %s34
      %s176 = ssub.s32 %s23, %s30
      %s177 = sor.u32 %s175, %s176
      %p178 = scmp.eq.s32.totalorder %s177, 0
      %s180 = sadd.s32 %s179, 1
      %s181 = scalar_select %p178, %s179, %s180
      %p184 = pneg %p178
      %p185 = scmp.eq.s32.totalorder %s15, 1
      %p186 = por %p184, %p185
      %p187 = scmp.ne.s32.totalorder %s179, %s182
      %p188 = scmp.eq.s32.totalorder %s15, 0
      %p189 = por %p187, %p188
      %p190 = scmp.ne.s32.totalorder %s179, %s182
      %p191 = scmp.eq.s32.totalorder %s20, 1
      %p192 = por %p190, %p191
      %p193 = scmp.ne.s32.totalorder %s182, %s183
      %p194 = scmp.eq.s32.totalorder %s20, 0
      %p195 = por %p193, %p194
      %p196 = scmp.ne.s32.totalorder %s182, %s183
      %p197 = scmp.eq.s32.totalorder %s21, 1
      %p198 = por %p196, %p197
      %p200 = scmp.ne.s32.totalorder %s183, %s199
      %p201 = scmp.eq.s32.totalorder %s21, 0
      %p202 = por %p200, %p201
      %p203 = scmp.le.s32.totalorder 1, %s15
      %p204 = scmp.lt.s32.totalorder %s15, 3
      %p205 = pnand %p203, %p204
      %p206 = pneg %p205
      // Predicated region
      $region9: #{tpu_custom_call.1} parent=5 // pred_check
        _
      $region10: #{tpu_custom_call.1} parent=5 // pred_check_branch
        %208 = sbr.rel (%p205) target = $region12
      $region11: #{tpu_custom_call.1} parent=5 // pred_region
        %s209 = ssub.s32 %s15, 1
        // Predicated region
        $region13: #{tpu_custom_call.1} parent=11 // pred_check
          %p210 = pneg %p104
        $region14: #{tpu_custom_call.1} parent=11 // pred_check_branch
          %212 = sbr.rel (%p210) target = $region16
        $region15: #{tpu_custom_call.1} parent=11 // pred_region
          _
        $region16: #{tpu_custom_call.1} parent=11 // pred_fallthru
          _
        // Predicated region
        $region17: #{tpu_custom_call.1} parent=11 // pred_check
          %p213 = pneg %p125
        $region18: #{tpu_custom_call.1} parent=11 // pred_check_branch
          %215 = sbr.rel (%p213) target = $region20
        $region19: #{tpu_custom_call.1} parent=11 // pred_region
          _
        $region20: #{tpu_custom_call.1} parent=11 // pred_fallthru
          _
        // Predicated region
        $region21: #{tpu_custom_call.1} parent=11 // pred_check
          %p216 = pneg %p146
        $region22: #{tpu_custom_call.1} parent=11 // pred_check_branch
          %218 = sbr.rel (%p216) target = $region24
        $region23: #{tpu_custom_call.1} parent=11 // pred_region
          _
        $region24: #{tpu_custom_call.1} parent=11 // pred_fallthru
          _
        // Predicated region
        $region25: #{tpu_custom_call.1} parent=11 // pred_check
          %p219 = pneg %p167
        $region26: #{tpu_custom_call.1} parent=11 // pred_check_branch
          %221 = sbr.rel (%p219) target = $region28
        $region27: #{tpu_custom_call.1} parent=11 // pred_region
          _
        $region28: #{tpu_custom_call.1} parent=11 // pred_fallthru
          _
      $region12: #{tpu_custom_call.1} parent=5 // pred_fallthru
        _
      %p222 = scmp.lt.s32.totalorder %s15, 2
      // Predicated region
      $region29: #{tpu_custom_call.1} parent=5 // pred_check
        %p223 = pneg %p222
      $region30: #{tpu_custom_call.1} parent=5 // pred_check_branch
        %225 = sbr.rel (%p223) target = $region32
      $region31: #{tpu_custom_call.1} parent=5 // pred_region
        // Predicated region
        $region33: #{tpu_custom_call.1} parent=31 // pred_check
          %p226 = pneg %p49
        $region34: #{tpu_custom_call.1} parent=31 // pred_check_branch
          %228 = sbr.rel (%p226) target = $region36
        $region35: #{tpu_custom_call.1} parent=31 // pred_region
          %s229 = smul.u32 2, %s23
          %p230 = scmp.lt.s32.totalorder %s22, 1
          %s231 = scalar_select %p230, %s22, 1
          %p232 = scmp.lt.s32.totalorder %s229, 1
          %s233 = scalar_select %p232, %s229, 1
          %s234 = smul.addr %s231, 2
          %s235 = sadd.s32 %s233, %s234
          %s236 = smul.addr %s235, 4
          %s237 = scalar_lea.vmem %s0, %s236
          %s238 = smul.u32 2, %s23
        $region36: #{tpu_custom_call.1} parent=31 // pred_fallthru
          _
        // Predicated region
        $region37: #{tpu_custom_call.1} parent=31 // pred_check
          %p239 = pneg %p77
        $region38: #{tpu_custom_call.1} parent=31 // pred_check_branch
          %241 = sbr.rel (%p239) target = $region40
        $region39: #{tpu_custom_call.1} parent=31 // pred_region
          %s242 = smul.u32 2, %s23
          %p243 = scmp.lt.s32.totalorder %s22, 1
          %s244 = scalar_select %p243, %s22, 1
          %p245 = scmp.lt.s32.totalorder %s242, 1
          %s246 = scalar_select %p245, %s242, 1
          %s247 = smul.addr %s244, 2
          %s248 = sadd.s32 %s246, %s247
          %s249 = smul.addr %s248, 8
          %s250 = scalar_lea.vmem %s1, %s249
          %s251 = smul.u32 2, %s23
        $region40: #{tpu_custom_call.1} parent=31 // pred_fallthru
          _
      $region32: #{tpu_custom_call.1} parent=5 // pred_fallthru
        _
      %p252 = scmp.le.s32.totalorder 1, %s15
      %p253 = scmp.lt.s32.totalorder %s15, 3
      %p254 = pnand %p252, %p253
      %p255 = pneg %p254
      // Predicated region
      $region41: #{tpu_custom_call.1} parent=5 // pred_check
        _
      $region42: #{tpu_custom_call.1} parent=5 // pred_check_branch
        %257 = sbr.rel (%p254) target = $region44
      $region43: #{tpu_custom_call.1} parent=5 // pred_region
        %s258 = ssub.s32 %s15, 1
        %s259 = smul.u32 2, %s25
        %p260 = scmp.lt.s32.totalorder %s24, 1
        %s261 = scalar_select %p260, %s24, 1
        %p262 = scmp.lt.s32.totalorder %s259, 1
        %s263 = scalar_select %p262, %s259, 1
        %s264 = smul.addr %s261, 2
        %s265 = sadd.s32 %s263, %s264
        %s266 = smul.addr %s265, 4
        %s267 = scalar_lea.vmem %s0, %s266
        %p268 = pneg %p55
        %p269 = pneg %p52
        %s270 = smul.u32 2, %s25
        %p271 = scmp.lt.s32.totalorder %s24, 1
        %s272 = scalar_select %p271, %s24, 1
        %p273 = scmp.lt.s32.totalorder %s270, 1
        %s274 = scalar_select %p273, %s270, 1
        %s275 = smul.addr %s272, 2
        %s276 = sadd.s32 %s274, %s275
        %s277 = smul.addr %s276, 8
        %s278 = scalar_lea.vmem %s1, %s277
        %p279 = pneg %p83
        %p280 = pneg %p80
        %p281 = pneg %p104
        %p282 = pneg %p101
        %p283 = pneg %p125
        %p284 = pneg %p122
        %p285 = pneg %p146
        %p286 = pneg %p143
        %p287 = pneg %p167
        %p288 = pneg %p164
        %p289 = pneg %p195
        %p290 = pneg %p192
        %s291 = sand.u32 %s182, 1
        %s292 = scalar_lea.sflag [#allocation3], %s291
        %s293 = sand.u32 %s182, 1
        %s294 = smul.addr %s293, 64
        %s295 = scalar_lea.vmem [#allocation2], %s294
        %s296 = smul.u32 2, %s25
        %p297 = scmp.lt.s32.totalorder %s24, 1
        %s298 = scalar_select %p297, %s24, 1
        %p299 = scmp.lt.s32.totalorder %s296, 1
        %s300 = scalar_select %p299, %s296, 1
        %s301 = smul.addr %s298, 2
        %s302 = sadd.s32 %s300, %s301
        %s303 = smul.addr %s302, 4
        %s304 = scalar_lea.vmem %s0, %s303
        %s305 = smul.u32 2, %s25
        %s306 = smul.u32 2, %s25
        %p307 = scmp.lt.s32.totalorder %s24, 1
        %s308 = scalar_select %p307, %s24, 1
        %p309 = scmp.lt.s32.totalorder %s306, 1
        %s310 = scalar_select %p309, %s306, 1
        %s311 = smul.addr %s308, 2
        %s312 = sadd.s32 %s310, %s311
        %s313 = smul.addr %s312, 8
        %s314 = scalar_lea.vmem %s1, %s313
        %s315 = smul.u32 2, %s25
        %s316 = smul.u32 2, %s25
        %v317 = vld [vmem:[%s2] sm:$0xff]
        %v318 = vld [vmem:[%s2 + $0x8] sm:$0xff]
        %v319 = vld [vmem:[%s2 + $0x10] sm:$0xff]
        %v320 = vld [vmem:[%s2 + $0x18] sm:$0xff]
        %v321 = vld [vmem:[%s4] sm:$0xff]
        %v322 = vld [vmem:[%s4 + $0x8] sm:$0xff]
        %v323 = vld [vmem:[%s4 + $0x10] sm:$0xff]
        %v324 = vld [vmem:[%s4 + $0x18] sm:$0xff]
        %v325 = vld [vmem:[%s3] sm:$0xff]
        %v326 = vld [vmem:[%s3 + $0x8] sm:$0xff]
        %v327 = vld [vmem:[%s3 + $0x10] sm:$0xff]
        %v328 = vld [vmem:[%s3 + $0x18] sm:$0xff]
        %v329 = vld [vmem:[%s5] sm:$0xff]
        %v330 = vld [vmem:[%s5 + $0x8] sm:$0xff]
        %v331 = vld [vmem:[%s5 + $0x10] sm:$0xff]
        %v332 = vld [vmem:[%s5 + $0x18] sm:$0xff]
        %v333 = vld [vmem:[%s304] sm:$0xff]
        %335 = vset.pattern.permute.xlu0 0
        %336 = vperm.xlu0 %335, %v325
        %v337 = vpop.permute.xlu0 %336
        %340 = vset.pattern.permute.xlu0 0
        %341 = vperm.xlu0 %340, %v326
        %v342 = vpop.permute.xlu0 %341
        %345 = vset.pattern.permute.xlu0 0
        %346 = vperm.xlu0 %345, %v327
        %v347 = vpop.permute.xlu0 %346
        %350 = vset.pattern.permute.xlu0 0
        %351 = vperm.xlu0 %350, %v328
        %v352 = vpop.permute.xlu0 %351
        %v355 = vcombine.high %v333, %v333
        %vm356 = vcmask 31744
        %v358 = vsel %vm356, %v317, 0
        %v361 = vsel %vm356, %v318, 0
        %v364 = vsel %vm356, %v319, 0
        %v367 = vsel %vm356, %v320, 0
        %vm369 = vcmask 1043456
        %v370 = vsel %vm369, %v333, 0
        %v372 = vsel %vm369, %v355, 0
        %374 = vmatprep.subr.mxu0 0.0
        %375 = vmatpush1.msra.mxu0 0.0
        %376 = vmatprep.subr.mxu0 0.0
        %377 = vmatpush1.msra.mxu0 0.0
        %378 = vmatprep.subr.mxu0 0.0
        %379 = vmatpush1.msra.mxu0 0.0
        %380 = vmatprep.subr.mxu0 0.0
        %381 = vmatpush1.msra.mxu0 0.0
        %382 = vmatprep.subr.mxu0 0.0
        %383 = vmatpush1.msra.mxu0 0.0
        %384 = vmatprep.subr.mxu0 0.0
        %385 = vmatpush1.msra.mxu0 0.0
        %386 = vmatprep.subr.mxu0 0.0
        %387 = vmatpush1.msra.mxu0 0.0
        %388 = vmatprep.subr.mxu0 0.0
        %389 = vmatpush1.msra.mxu0 0.0
        %390 = vmatprep.subr.mxu0 0.0
        %391 = vmatpush1.msra.mxu0 0.0
        %392 = vmatprep.subr.mxu0 0.0
        %393 = vmatpush1.msra.mxu0 0.0
        %394 = vmatprep.subr.mxu0 0.0
        %395 = vmatpush1.msra.mxu0 0.0
        %396 = vmatprep.subr.mxu0 0.0
        %397 = vmatpush1.msra.mxu0 0.0
        %398 = vmatprep.subr.mxu0 0.0
        %399 = vmatpush1.msra.mxu0 0.0
        %400 = vmatprep.subr.mxu0 0.0
        %401 = vmatpush1.msra.mxu0 0.0
        %402 = vmatprep.subr.mxu0 0.0
        %403 = vmatpush1.msra.mxu0 0.0
        %404 = vmatprep.subr.mxu0 %v372
        %405 = vmatpush1.msra.mxu0 %v370
        %406 = vmatprep.subr.mxu0 0.0
        %407 = vmatpush2.msra.mxu0 0.0
        %408 = vmatprep.subr.mxu0 0.0
        %409 = vmatpush2.msra.mxu0 0.0
        %410 = vmatprep.subr.mxu0 0.0
        %411 = vmatpush2.msra.mxu0 0.0
        %412 = vmatprep.subr.mxu0 0.0
        %413 = vmatpush2.msra.mxu0 0.0
        %414 = vmatprep.subr.mxu0 0.0
        %415 = vmatpush2.msra.mxu0 0.0
        %416 = vmatprep.subr.mxu0 0.0
        %417 = vmatpush2.msra.mxu0 0.0
        %418 = vmatprep.subr.mxu0 0.0
        %419 = vmatpush2.msra.mxu0 0.0
        %420 = vmatprep.subr.mxu0 0.0
        %421 = vmatpush2.msra.mxu0 0.0
        %422 = vmatprep.subr.mxu0 0.0
        %423 = vmatpush2.msra.mxu0 0.0
        %424 = vmatprep.subr.mxu0 0.0
        %425 = vmatpush2.msra.mxu0 0.0
        %426 = vmatprep.subr.mxu0 0.0
        %427 = vmatpush2.msra.mxu0 0.0
        %428 = vmatprep.subr.mxu0 0.0
        %429 = vmatpush2.msra.mxu0 0.0
        %430 = vmatprep.subr.mxu0 0.0
        %431 = vmatpush2.msra.mxu0 0.0
        %432 = vmatprep.subr.mxu0 0.0
        %433 = vmatpush2.msra.mxu0 0.0
        %434 = vmatprep.subr.mxu0 0.0
        %435 = vmatpush2.msra.mxu0 0.0
        %436 = vmatprep.subr.mxu0 0.0
        %437 = vmatpush2.msra.mxu0 0.0
        %438 = vmatprep.mubr.f32.mxu0 0.0
        %439 = vmatmul.mubr.f32.gmra.mxu0 %v358
        %v440 = vpop.f32.mrf.mxu0
        %v441 = vadd.f32 %v337, %v440
        %v442 = vpop.f32.mrf.mxu0
        %v443 = vadd.f32 %v337, %v442
        %444 = vmatprep.mubr.f32.mxu0 0.0
        %445 = vmatmul.mubr.f32.gmra.mxu0 %v361
        %v446 = vpop.f32.mrf.mxu0
        %v447 = vadd.f32 %v342, %v446
        %v448 = vpop.f32.mrf.mxu0
        %v449 = vadd.f32 %v342, %v448
        %450 = vmatprep.mubr.f32.mxu0 0.0
        %451 = vmatmul.mubr.f32.gmra.mxu0 %v364
        %v452 = vpop.f32.mrf.mxu0
        %v453 = vadd.f32 %v347, %v452
        %v454 = vpop.f32.mrf.mxu0
        %v455 = vadd.f32 %v347, %v454
        %456 = vmatprep.mubr.f32.mxu0 0.0
        %457 = vmatmul.mubr.f32.gmra.mxu0 %v367
        %v458 = vpop.f32.mrf.mxu0
        %v459 = vadd.f32 %v352, %v458
        %v460 = vpop.f32.mrf.mxu0
        %v461 = vadd.f32 %v352, %v460
        %462 = vdwg.mxu0
        %v463 = vld [vmem:[%s314] sm:$0xff]
        %v464 = vld [vmem:[%s314 + $0x8] sm:$0xff]
        %466 = vset.pattern.permute.xlu0 0
        %467 = vperm.xlu0 %466, %v329
        %v468 = vpop.permute.xlu0 %467
        %471 = vset.pattern.permute.xlu0 0
        %472 = vperm.xlu0 %471, %v330
        %v473 = vpop.permute.xlu0 %472
        %476 = vset.pattern.permute.xlu0 0
        %477 = vperm.xlu0 %476, %v331
        %v478 = vpop.permute.xlu0 %477
        %481 = vset.pattern.permute.xlu0 0
        %482 = vperm.xlu0 %481, %v332
        %v483 = vpop.permute.xlu0 %482
        %vm485 = vcmask 64512
        %v487 = vsel %vm485, %v321, 0
        %v490 = vsel %vm485, %v322, 0
        %v493 = vsel %vm485, %v323, 0
        %v496 = vsel %vm485, %v324, 0
        %498 = vmatprep.subr.mxu0 0.0
        %499 = vmatpush1.msra.mxu0 0.0
        %500 = vmatprep.subr.mxu0 0.0
        %501 = vmatpush1.msra.mxu0 0.0
        %502 = vmatprep.subr.mxu0 0.0
        %503 = vmatpush1.msra.mxu0 0.0
        %504 = vmatprep.subr.mxu0 0.0
        %505 = vmatpush1.msra.mxu0 0.0
        %506 = vmatprep.subr.mxu0 0.0
        %507 = vmatpush1.msra.mxu0 0.0
        %508 = vmatprep.subr.mxu0 0.0
        %509 = vmatpush1.msra.mxu0 0.0
        %510 = vmatprep.subr.mxu0 0.0
        %511 = vmatpush1.msra.mxu0 0.0
        %512 = vmatprep.subr.mxu0 0.0
        %513 = vmatpush1.msra.mxu0 0.0
        %514 = vmatprep.subr.mxu0 0.0
        %515 = vmatpush1.msra.mxu0 0.0
        %516 = vmatprep.subr.mxu0 0.0
        %517 = vmatpush1.msra.mxu0 0.0
        %518 = vmatprep.subr.mxu0 0.0
        %519 = vmatpush1.msra.mxu0 0.0
        %520 = vmatprep.subr.mxu0 0.0
        %521 = vmatpush1.msra.mxu0 0.0
        %522 = vmatprep.subr.mxu0 0.0
        %523 = vmatpush1.msra.mxu0 0.0
        %524 = vmatprep.subr.mxu0 0.0
        %525 = vmatpush1.msra.mxu0 0.0
        %526 = vmatprep.subr.mxu0 0.0
        %527 = vmatpush1.msra.mxu0 0.0
        %528 = vmatprep.subr.mxu0 %v464
        %529 = vmatpush1.msra.mxu0 %v463
        %530 = vmatprep.subr.mxu0 0.0
        %531 = vmatpush2.msra.mxu0 0.0
        %532 = vmatprep.subr.mxu0 0.0
        %533 = vmatpush2.msra.mxu0 0.0
        %534 = vmatprep.subr.mxu0 0.0
        %535 = vmatpush2.msra.mxu0 0.0
        %536 = vmatprep.subr.mxu0 0.0
        %537 = vmatpush2.msra.mxu0 0.0
        %538 = vmatprep.subr.mxu0 0.0
        %539 = vmatpush2.msra.mxu0 0.0
        %540 = vmatprep.subr.mxu0 0.0
        %541 = vmatpush2.msra.mxu0 0.0
        %542 = vmatprep.subr.mxu0 0.0
        %543 = vmatpush2.msra.mxu0 0.0
        %544 = vmatprep.subr.mxu0 0.0
        %545 = vmatpush2.msra.mxu0 0.0
        %546 = vmatprep.subr.mxu0 0.0
        %547 = vmatpush2.msra.mxu0 0.0
        %548 = vmatprep.subr.mxu0 0.0
        %549 = vmatpush2.msra.mxu0 0.0
        %550 = vmatprep.subr.mxu0 0.0
        %551 = vmatpush2.msra.mxu0 0.0
        %552 = vmatprep.subr.mxu0 0.0
        %553 = vmatpush2.msra.mxu0 0.0
        %554 = vmatprep.subr.mxu0 0.0
        %555 = vmatpush2.msra.mxu0 0.0
        %556 = vmatprep.subr.mxu0 0.0
        %557 = vmatpush2.msra.mxu0 0.0
        %558 = vmatprep.subr.mxu0 0.0
        %559 = vmatpush2.msra.mxu0 0.0
        %560 = vmatprep.subr.mxu0 0.0
        %561 = vmatpush2.msra.mxu0 0.0
        %562 = vmatprep.mubr.f32.mxu0 0.0
        %563 = vmatmul.mubr.f32.gmra.mxu0 %v487
        %v564 = vpop.f32.mrf.mxu0
        %v565 = vadd.f32 %v468, %v564
        %v566 = vpop.f32.mrf.mxu0
        %v567 = vadd.f32 %v468, %v566
        %568 = vmatprep.mubr.f32.mxu0 0.0
        %569 = vmatmul.mubr.f32.gmra.mxu0 %v490
        %v570 = vpop.f32.mrf.mxu0
        %v571 = vadd.f32 %v473, %v570
        %v572 = vpop.f32.mrf.mxu0
        %v573 = vadd.f32 %v473, %v572
        %574 = vmatprep.mubr.f32.mxu0 0.0
        %575 = vmatmul.mubr.f32.gmra.mxu0 %v493
        %v576 = vpop.f32.mrf.mxu0
        %v577 = vadd.f32 %v478, %v576
        %v578 = vpop.f32.mrf.mxu0
        %v579 = vadd.f32 %v478, %v578
        %580 = vmatprep.mubr.f32.mxu0 0.0
        %581 = vmatmul.mubr.f32.gmra.mxu0 %v496
        %v582 = vpop.f32.mrf.mxu0
        %v583 = vadd.f32 %v483, %v582
        %v584 = vpop.f32.mrf.mxu0
        %v585 = vadd.f32 %v483, %v584
        %586 = vdwg.mxu0
        %v587 = vtanh.pop %v441
        %v588 = vtanh.pop %v443
        %v589 = vtanh.pop %v447
        %v590 = vtanh.pop %v449
        %v591 = vtanh.pop %v453
        %v592 = vtanh.pop %v455
        %v593 = vtanh.pop %v459
        %v594 = vtanh.pop %v461
        %v595 = vtanh.pop %v565
        %v596 = vtanh.pop %v567
        %v597 = vtanh.pop %v571
        %v598 = vtanh.pop %v573
        %v599 = vtanh.pop %v577
        %v600 = vtanh.pop %v579
        %v601 = vtanh.pop %v583
        %v602 = vtanh.pop %v585
        %v603 = vmul.f32 %v587, %v595
        %v604 = vmul.f32 %v588, %v596
        %v605 = vmul.f32 %v589, %v597
        %v606 = vmul.f32 %v590, %v598
        %v607 = vmul.f32 %v591, %v599
        %v608 = vmul.f32 %v592, %v600
        %v609 = vmul.f32 %v593, %v601
        %v610 = vmul.f32 %v594, %v602
        %611 = vst [vmem:[%s295] sm:$0xff] %v603
        %612 = vst [vmem:[%s295 + $0x8] sm:$0xff] %v604
        %613 = vst [vmem:[%s295 + $0x10] sm:$0xff] %v605
        %614 = vst [vmem:[%s295 + $0x18] sm:$0xff] %v606
        %615 = vst [vmem:[%s295 + $0x20] sm:$0xff] %v607
        %616 = vst [vmem:[%s295 + $0x28] sm:$0xff] %v608
        %617 = vst [vmem:[%s295 + $0x30] sm:$0xff] %v609
        %618 = vst [vmem:[%s295 + $0x38] sm:$0xff] %v610
        %s619 = sand.u32 %s182, 1
        %s620 = scalar_lea.sflag [#allocation3], %s619
        %s621 = sand.u32 %s182, 1
        %s622 = smul.addr %s621, 64
        %s623 = scalar_lea.vmem [#allocation2], %s622
        // Predicated region
        $region45: #{tpu_custom_call.1} parent=43 // pred_check
          %p624 = pneg %p192
        $region46: #{tpu_custom_call.1} parent=43 // pred_check_branch
          %626 = sbr.rel (%p624) target = $region48
        $region47: #{tpu_custom_call.1} parent=43 // pred_region
          %s627 = smul.u32 2, %s25
          %s629 = ssub.s32 1024, 1024
          %630 = vsyncadd %s620, %s629
          %s631 = smul.addr %s24, 8
          %s632 = sadd.s32 %s627, %s631
          %s633 = smul.addr %s632, 128
          %s634 = scalar_lea.hbm %s6, %s633
          %s635 = sshll.u32 %s623, 4
          %s636 = int_to_ptr.vmem [resolvable:$true] %s635
          %641 = dma.vmem_to_hbm [thread:$0]  %s636, 1024, %s634, %s620, 256, 256, 16
        $region48: #{tpu_custom_call.1} parent=43 // pred_fallthru
          _
      $region44: #{tpu_custom_call.1} parent=5 // pred_fallthru
        _
      %p642 = scmp.le.s32.totalorder 2, %s15
      // Predicated region
      $region49: #{tpu_custom_call.1} parent=5 // pred_check
        %p643 = pneg %p642
      $region50: #{tpu_custom_call.1} parent=5 // pred_check_branch
        %645 = sbr.rel (%p643) target = $region52
      $region51: #{tpu_custom_call.1} parent=5 // pred_region
        %s646 = ssub.s32 %s15, 2
        // Predicated region
        $region53: #{tpu_custom_call.1} parent=51 // pred_check
          %p647 = pneg %p198
        $region54: #{tpu_custom_call.1} parent=51 // pred_check_branch
          %649 = sbr.rel (%p647) target = $region56
        $region55: #{tpu_custom_call.1} parent=51 // pred_region
          %s650 = sand.u32 %s183, 1
          %s651 = scalar_lea.sflag [#allocation3], %s650
          %s652 = sand.u32 %s183, 1
          %s653 = smul.addr %s652, 64
          %s654 = scalar_lea.vmem [#allocation2], %s653
          %655 = dma.done %s651, 1024
        $region56: #{tpu_custom_call.1} parent=51 // pred_fallthru
          _
      $region52: #{tpu_custom_call.1} parent=5 // pred_fallthru
        _
    $region6: #{tpu_custom_call.1} parent=1 // loop_footer
      %s19 = sadd.s32 1, %s15
    $region7: #{tpu_custom_call.1} parent=1 // loop_footer_branch
      %14 = sbr.rel target = $region3
    $region8: #{tpu_custom_call.1} parent=1 // loop_exit
      _
    %656 = vsyncpa [#allocation3], 1
    %s657 = scalar_lea.sflag [#allocation3], 1
    %658 = vsyncpa %s657, 1

</llo_original>
